<compile_context>
chip_gen: v7x
topology: tpu7x:2x2x1
jax: 0.10.0
libtpu: 0.0.40
codegen_flags: <defaults>
</compile_context>

<pallas_src>
import functools

import jax
import jax.numpy as jnp
from jax.experimental import pallas as pl
from jax.experimental.pallas import tpu as pltpu


def _basic_block_kernel(x_ref, w1_ref, b1_ref, w2_ref, b2_ref, mask_ref,
                        o_ref, pat_ref, *, H, W, C, Cpad, Nb):
    """Fused ResNet basic block for Nb images.

    x_ref:    (Nb, C, H*W)        input images, spatial flattened on lanes
    w*_ref:   (Cpad, 9*Cpad)      conv weights as sublane-padded im2col mats
    b*_ref:   (Cpad, 1)           biases (zero-padded rows)
    mask_ref: (9, Nb*H*W)         per-tap boundary masks (1 inside, 0 outside)
    o_ref:    (Nb, C, H*W)        output (same unpadded layout as the input)
    pat_ref:  (9*Cpad, Nb*H*W)    VMEM im2col patch matrix
    """
    HW = H * W
    L = Nb * HW

    # Concatenated-lane, sublane-padded activation: (Cpad, Nb*HW).
    # Lane offsets are multiples of HW (>=128-aligned) -> just vreg placement.
    parts = [x_ref[n].astype(jnp.float32) for n in range(Nb)]
    xcat = parts[0] if Nb == 1 else jnp.concatenate(parts, axis=-1)
    if Cpad > C:
        xcat = jnp.concatenate(
            [xcat, jnp.zeros((Cpad - C, L), jnp.float32)], axis=0)

    def build_patch(src):
        """Fill pat_ref for a 3x3 SAME conv over `src` ((Cpad, Nb*HW))."""
        for tap in range(9):
            dy, dx = tap // 3 - 1, tap % 3 - 1
            shift = (-(dy * W + dx)) % L          # static, non-negative
            t = pltpu.roll(src, shift=shift, axis=1) if shift else src
            if dy or dx:                          # zero out-of-image taps
                t = t * mask_ref[tap:tap + 1, :]
            # 8-sublane-aligned, full-tile, lane-dense store.
            pat_ref[tap * Cpad:(tap + 1) * Cpad, :] = t

    def conv(w_ref, b_ref):
        return jnp.dot(w_ref[...], pat_ref[...],
                       preferred_element_type=jnp.float32) + b_ref[...]

    # conv1 + bias + ReLU (never leaves VMEM / vregs)
    build_patch(xcat)
    out1 = jnp.maximum(conv(w1_ref, b1_ref), 0.0)

    # conv2 + bias + residual add + ReLU
    build_patch(out1)
    out2 = jnp.maximum(conv(w2_ref, b2_ref) + xcat, 0.0)

    # Lane-dense (256-wide) stores per image, no padding ring to strip later.
    for n in range(Nb):
        o_ref[n] = out2[:C, n * HW:(n + 1) * HW].astype(o_ref.dtype)


def _pick_nb(n, max_nb=8):
    """Images per grid step: batch as much as possible, but keep >=2 grid
    steps when n >= 2 so megacore / both v7x TensorCores get work."""
    if n <= 1:
        return 1
    nb = min(max_nb, max(1, n // 2))
    while n % nb:
        nb -= 1
    return nb


def basic_block_fused_forward(x_nchw, params):
    """BasicBlockFused.forward with block_gates=(True, True), downsample=None,
    stride=1, ch_group=None.  x_nchw: (N, C, H, W); returns (N, C, H, W)."""
    N, C, H, W = x_nchw.shape
    HW = H * W
    Cpad = ((C + 7) // 8) * 8
    Nb = _pick_nb(N)
    G = N // Nb
    L = Nb * HW
    dtype = x_nchw.dtype

    # free reshape (no transpose): channel-major, spatial flattened on lanes
    x_flat = x_nchw.reshape(N, C, HW)

    # conv weights (OIHW) -> sublane-padded (Cpad, 9*Cpad) im2col matrices,
    # kept in f32 (no silent precision loss vs. the PyTorch reference).
    def to_mat(w_oihw):
        co, ci = w_oihw.shape[0], w_oihw.shape[1]
        wt = jnp.transpose(w_oihw, (0, 2, 3, 1)).reshape(co, 9, ci)
        wt = jnp.pad(wt, ((0, Cpad - co), (0, 0), (0, Cpad - ci)))
        return wt.reshape(Cpad, 9 * Cpad).astype(jnp.float32)

    w1m = to_mat(params["w1"])
    w2m = to_mat(params["w2"])
    b1 = jnp.pad(params["b1"].astype(jnp.float32), (0, Cpad - C)).reshape(Cpad, 1)
    b2 = jnp.pad(params["b2"].astype(jnp.float32), (0, Cpad - C)).reshape(Cpad, 1)

    # Per-tap validity masks over the Nb*HW lane domain (periodic per image).
    # Constant index_map -> Pallas DMAs this once for the whole grid.
    ii = jnp.arange(H)
    jj = jnp.arange(W)
    mask_rows = []
    for tap in range(9):
        dy, dx = tap // 3 - 1, tap % 3 - 1
        rm = (ii + dy >= 0) & (ii + dy < H)
        cm = (jj + dx >= 0) & (jj + dx < W)
        m = (rm[:, None] & cm[None, :]).reshape(1, HW)
        mask_rows.append(jnp.tile(m, (1, Nb)))
    masks = jnp.concatenate(mask_rows, axis=0).astype(jnp.float32)  # (9, L)

    kern = functools.partial(_basic_block_kernel,
                             H=H, W=W, C=C, Cpad=Cpad, Nb=Nb)

    out = pl.pallas_call(
        kern,
        out_shape=jax.ShapeDtypeStruct((N, C, HW), dtype),
        grid_spec=pltpu.PrefetchScalarGridSpec(
            num_scalar_prefetch=0,
            grid=(G,),
            in_specs=[
                pl.BlockSpec((Nb, C, HW), lambda g: (g, 0, 0)),       # x
                pl.BlockSpec((Cpad, 9 * Cpad), lambda g: (0, 0)),     # w1
                pl.BlockSpec((Cpad, 1), lambda g: (0, 0)),            # b1
                pl.BlockSpec((Cpad, 9 * Cpad), lambda g: (0, 0)),     # w2
                pl.BlockSpec((Cpad, 1), lambda g: (0, 0)),            # b2
                pl.BlockSpec((9, L), lambda g: (0, 0)),               # masks
            ],
            out_specs=pl.BlockSpec((Nb, C, HW), lambda g: (g, 0, 0)),
            scratch_shapes=[
                pltpu.VMEM((9 * Cpad, L), jnp.float32),   # im2col patch matrix
            ],
        ),
        compiler_params=pltpu.CompilerParams(
            dimension_semantics=("parallel",)),           # image blocks -> megacore
    )(x_flat, w1m, b1, w2m, b2, masks)

    # free reshape, no slicing / extra HBM copy pass
    return out.reshape(N, C, H, W)


def _reference_forward(x_nchw, params):
    """Plain-JAX reference for validation (matches the PyTorch module)."""
    def conv(x, w_oihw, b):
        y = jax.lax.conv_general_dilated(
            x, w_oihw, window_strides=(1, 1), padding="SAME",
            dimension_numbers=("NCHW", "OIHW", "NCHW"))
        return y + b[None, :, None, None]

    out = jax.nn.relu(conv(x_nchw, params["w1"], params["b1"]))
    out = conv(out, params["w2"], params["b2"]) + x_nchw
    return jax.nn.relu(out)


if __name__ == "__main__":
    key = jax.random.PRNGKey(0)
    k1, k2, k3, k4, kx = jax.random.split(key, 5)

    C, H, W = 4, 16, 16                 # inplanes = planes = 4, stride = 1
    inplanes = planes = C

    # conv3x3_bias(inplanes, planes): weight (Cout, Cin, 3, 3) + bias (Cout,)
    w1 = jax.random.normal(k1, (planes, inplanes, 3, 3), jnp.float32) * 0.1
    b1 = jax.random.normal(k2, (planes,), jnp.float32) * 0.1
    w2 = jax.random.normal(k3, (planes, planes, 3, 3), jnp.float32) * 0.1
    b2 = jax.random.normal(k4, (planes,), jnp.float32) * 0.1
    params = {"w1": w1, "b1": b1, "w2": w2, "b2": b2}

    # N=2 exercises Nb=1 / grid=(2,) (megacore path); N=8 exercises the
    # lane-batched Nb=4 / grid=(2,) path.
    for N in (2, 8):
        x = jax.random.normal(jax.random.fold_in(kx, N),
                              (N, C, H, W), jnp.float32)
        out = jax.block_until_ready(basic_block_fused_forward(x, params))
        ref = jax.block_until_ready(_reference_forward(x, params))
        assert out.shape == (N, C, H, W)
        err = float(jnp.max(jnp.abs(out - ref)))
        assert jnp.allclose(out, ref, atol=1e-4, rtol=1e-4), err

    print("KERNEL_OK")
</pallas_src>

<mosaic_0001>
module attributes {stable_mosaic.version = 11 : i64} {
  func.func @_basic_block_kernel(%arg0: i32, %arg1: memref<1x4x256xf32, #tpu.memory_space<vmem>>, %arg2: memref<8x72xf32, #tpu.memory_space<vmem>>, %arg3: memref<8x1xf32, #tpu.memory_space<vmem>>, %arg4: memref<8x72xf32, #tpu.memory_space<vmem>>, %arg5: memref<8x1xf32, #tpu.memory_space<vmem>>, %arg6: memref<9x256xf32, #tpu.memory_space<vmem>>, %arg7: memref<1x4x256xf32, #tpu.memory_space<vmem>>, %arg8: memref<72x256xf32, #tpu.memory_space<vmem>>) attributes {dimension_semantics = [#tpu.dimension_semantics<parallel>], iteration_bounds = array<i64: 2>, scalar_prefetch = 0 : i64, scratch_operands = 1 : i64, tpu.core_type = #tpu.core_type<tc>, window_params = [{transform_indices = @transform_0, window_bounds = array<i64: 1, 4, 256>}, {pipeline_mode = #tpu.pipeline_mode<synchronous>, transform_indices = @transform_1, window_bounds = array<i64: 8, 72>}, {pipeline_mode = #tpu.pipeline_mode<synchronous>, transform_indices = @transform_2, window_bounds = array<i64: 8, 1>}, {pipeline_mode = #tpu.pipeline_mode<synchronous>, transform_indices = @transform_3, window_bounds = array<i64: 8, 72>}, {pipeline_mode = #tpu.pipeline_mode<synchronous>, transform_indices = @transform_4, window_bounds = array<i64: 8, 1>}, {pipeline_mode = #tpu.pipeline_mode<synchronous>, transform_indices = @transform_5, window_bounds = array<i64: 9, 256>}, {transform_indices = @transform_6, window_bounds = array<i64: 1, 4, 256>}]} {
    %c0 = arith.constant 0 : index
    %c0_0 = arith.constant 0 : index
    %c0_1 = arith.constant 0 : index
    %0 = vector.load %arg1[%c0, %c0_0, %c0_1] : memref<1x4x256xf32, #tpu.memory_space<vmem>>, vector<1x4x256xf32>
    %1 = vector.shape_cast %0 : vector<1x4x256xf32> to vector<4x256xf32>
    %cst = arith.constant 0.000000e+00 : f32
    %2 = vector.broadcast %cst : f32 to vector<4x256xf32>
    %3 = tpu.concatenate %1, %2 in 0 : vector<4x256xf32>, vector<4x256xf32> -> vector<8x256xf32>
    %c17_i32 = arith.constant 17 : i32
    %4 = tpu.dynamic_rotate %3 by %c17_i32 dim 1 : vector<8x256xf32>, i32 -> vector<8x256xf32>
    %c0_2 = arith.constant 0 : index
    %c0_3 = arith.constant 0 : index
    %5 = vector.load %arg6[%c0_2, %c0_3] : memref<9x256xf32, #tpu.memory_space<vmem>>, vector<1x256xf32>
    %6 = vector.broadcast %5 : vector<1x256xf32> to vector<8x256xf32>
    %7 = arith.mulf %4, %6 : vector<8x256xf32>
    %c0_4 = arith.constant 0 : index
    %c0_5 = arith.constant 0 : index
    %8 = vector.load %arg8[%c0_4, %c0_5] : memref<72x256xf32, #tpu.memory_space<vmem>>, vector<8x256xf32>
    tpu.vector_store %arg8[%c0_4, %c0_5], %7 {strides = array<i32>} : memref<72x256xf32, #tpu.memory_space<vmem>>, vector<8x256xf32>,
    %c16_i32 = arith.constant 16 : i32
    %9 = tpu.dynamic_rotate %3 by %c16_i32 dim 1 : vector<8x256xf32>, i32 -> vector<8x256xf32>
    %c1 = arith.constant 1 : index
    %c0_6 = arith.constant 0 : index
    %10 = vector.load %arg6[%c1, %c0_6] : memref<9x256xf32, #tpu.memory_space<vmem>>, vector<1x256xf32>
    %11 = vector.broadcast %10 : vector<1x256xf32> to vector<8x256xf32>
    %12 = arith.mulf %9, %11 : vector<8x256xf32>
    %c8 = arith.constant 8 : index
    %c0_7 = arith.constant 0 : index
    %13 = vector.load %arg8[%c8, %c0_7] : memref<72x256xf32, #tpu.memory_space<vmem>>, vector<8x256xf32>
    tpu.vector_store %arg8[%c8, %c0_7], %12 {strides = array<i32>} : memref<72x256xf32, #tpu.memory_space<vmem>>, vector<8x256xf32>,
    %c15_i32 = arith.constant 15 : i32
    %14 = tpu.dynamic_rotate %3 by %c15_i32 dim 1 : vector<8x256xf32>, i32 -> vector<8x256xf32>
    %c2 = arith.constant 2 : index
    %c0_8 = arith.constant 0 : index
    %15 = vector.load %arg6[%c2, %c0_8] : memref<9x256xf32, #tpu.memory_space<vmem>>, vector<1x256xf32>
    %16 = vector.broadcast %15 : vector<1x256xf32> to vector<8x256xf32>
    %17 = arith.mulf %14, %16 : vector<8x256xf32>
    %c16 = arith.constant 16 : index
    %c0_9 = arith.constant 0 : index
    %18 = vector.load %arg8[%c16, %c0_9] : memref<72x256xf32, #tpu.memory_space<vmem>>, vector<8x256xf32>
    tpu.vector_store %arg8[%c16, %c0_9], %17 {strides = array<i32>} : memref<72x256xf32, #tpu.memory_space<vmem>>, vector<8x256xf32>,
    %c1_i32 = arith.constant 1 : i32
    %19 = tpu.dynamic_rotate %3 by %c1_i32 dim 1 : vector<8x256xf32>, i32 -> vector<8x256xf32>
    %c3 = arith.constant 3 : index
    %c0_10 = arith.constant 0 : index
    %20 = vector.load %arg6[%c3, %c0_10] : memref<9x256xf32, #tpu.memory_space<vmem>>, vector<1x256xf32>
    %21 = vector.broadcast %20 : vector<1x256xf32> to vector<8x256xf32>
    %22 = arith.mulf %19, %21 : vector<8x256xf32>
    %c24 = arith.constant 24 : index
    %c0_11 = arith.constant 0 : index
    %23 = vector.load %arg8[%c24, %c0_11] : memref<72x256xf32, #tpu.memory_space<vmem>>, vector<8x256xf32>
    tpu.vector_store %arg8[%c24, %c0_11], %22 {strides = array<i32>} : memref<72x256xf32, #tpu.memory_space<vmem>>, vector<8x256xf32>,
    %c32 = arith.constant 32 : index
    %c0_12 = arith.constant 0 : index
    %24 = vector.load %arg8[%c32, %c0_12] : memref<72x256xf32, #tpu.memory_space<vmem>>, vector<8x256xf32>
    tpu.vector_store %arg8[%c32, %c0_12], %3 {strides = array<i32>} : memref<72x256xf32, #tpu.memory_space<vmem>>, vector<8x256xf32>,
    %c255_i32 = arith.constant 255 : i32
    %25 = tpu.dynamic_rotate %3 by %c255_i32 dim 1 : vector<8x256xf32>, i32 -> vector<8x256xf32>
    %c5 = arith.constant 5 : index
    %c0_13 = arith.constant 0 : index
    %26 = vector.load %arg6[%c5, %c0_13] : memref<9x256xf32, #tpu.memory_space<vmem>>, vector<1x256xf32>
    %27 = vector.broadcast %26 : vector<1x256xf32> to vector<8x256xf32>
    %28 = arith.mulf %25, %27 : vector<8x256xf32>
    %c40 = arith.constant 40 : index
    %c0_14 = arith.constant 0 : index
    %29 = vector.load %arg8[%c40, %c0_14] : memref<72x256xf32, #tpu.memory_space<vmem>>, vector<8x256xf32>
    tpu.vector_store %arg8[%c40, %c0_14], %28 {strides = array<i32>} : memref<72x256xf32, #tpu.memory_space<vmem>>, vector<8x256xf32>,
    %c241_i32 = arith.constant 241 : i32
    %30 = tpu.dynamic_rotate %3 by %c241_i32 dim 1 : vector<8x256xf32>, i32 -> vector<8x256xf32>
    %c6 = arith.constant 6 : index
    %c0_15 = arith.constant 0 : index
    %31 = vector.load %arg6[%c6, %c0_15] : memref<9x256xf32, #tpu.memory_space<vmem>>, vector<1x256xf32>
    %32 = vector.broadcast %31 : vector<1x256xf32> to vector<8x256xf32>
    %33 = arith.mulf %30, %32 : vector<8x256xf32>
    %c48 = arith.constant 48 : index
    %c0_16 = arith.constant 0 : index
    %34 = vector.load %arg8[%c48, %c0_16] : memref<72x256xf32, #tpu.memory_space<vmem>>, vector<8x256xf32>
    tpu.vector_store %arg8[%c48, %c0_16], %33 {strides = array<i32>} : memref<72x256xf32, #tpu.memory_space<vmem>>, vector<8x256xf32>,
    %c240_i32 = arith.constant 240 : i32
    %35 = tpu.dynamic_rotate %3 by %c240_i32 dim 1 : vector<8x256xf32>, i32 -> vector<8x256xf32>
    %c7 = arith.constant 7 : index
    %c0_17 = arith.constant 0 : index
    %36 = vector.load %arg6[%c7, %c0_17] : memref<9x256xf32, #tpu.memory_space<vmem>>, vector<1x256xf32>
    %37 = vector.broadcast %36 : vector<1x256xf32> to vector<8x256xf32>
    %38 = arith.mulf %35, %37 : vector<8x256xf32>
    %c56 = arith.constant 56 : index
    %c0_18 = arith.constant 0 : index
    %39 = vector.load %arg8[%c56, %c0_18] : memref<72x256xf32, #tpu.memory_space<vmem>>, vector<8x256xf32>
    tpu.vector_store %arg8[%c56, %c0_18], %38 {strides = array<i32>} : memref<72x256xf32, #tpu.memory_space<vmem>>, vector<8x256xf32>,
    %c239_i32 = arith.constant 239 : i32
    %40 = tpu.dynamic_rotate %3 by %c239_i32 dim 1 : vector<8x256xf32>, i32 -> vector<8x256xf32>
    %c8_19 = arith.constant 8 : index
    %c0_20 = arith.constant 0 : index
    %41 = vector.load %arg6[%c8_19, %c0_20] : memref<9x256xf32, #tpu.memory_space<vmem>>, vector<1x256xf32>
    %42 = vector.broadcast %41 : vector<1x256xf32> to vector<8x256xf32>
    %43 = arith.mulf %40, %42 : vector<8x256xf32>
    %c64 = arith.constant 64 : index
    %c0_21 = arith.constant 0 : index
    %44 = vector.load %arg8[%c64, %c0_21] : memref<72x256xf32, #tpu.memory_space<vmem>>, vector<8x256xf32>
    tpu.vector_store %arg8[%c64, %c0_21], %43 {strides = array<i32>} : memref<72x256xf32, #tpu.memory_space<vmem>>, vector<8x256xf32>,
    %c0_22 = arith.constant 0 : index
    %c0_23 = arith.constant 0 : index
    %45 = vector.load %arg2[%c0_22, %c0_23] : memref<8x72xf32, #tpu.memory_space<vmem>>, vector<8x72xf32>
    %c0_24 = arith.constant 0 : index
    %c0_25 = arith.constant 0 : index
    %46 = vector.load %arg8[%c0_24, %c0_25] : memref<72x256xf32, #tpu.memory_space<vmem>>, vector<72x256xf32>
    %cst_26 = arith.constant dense<0.000000e+00> : vector<8x256xf32>
    %47 = tpu.matmul %45, %46, %cst_26 {dimension_numbers = #tpu.dot_dimension_numbers<[1], [0], [0], [1], [0, 0, 1, 1], [], []>} : vector<8x72xf32>, vector<72x256xf32>, vector<8x256xf32> -> vector<8x256xf32>
    %c0_27 = arith.constant 0 : index
    %c0_28 = arith.constant 0 : index
    %48 = vector.load %arg3[%c0_27, %c0_28] : memref<8x1xf32, #tpu.memory_space<vmem>>, vector<8x1xf32>
    %49 = vector.broadcast %48 : vector<8x1xf32> to vector<8x256xf32>
    %50 = arith.addf %47, %49 : vector<8x256xf32>
    %cst_29 = arith.constant 0.000000e+00 : f32
    %51 = vector.broadcast %cst_29 : f32 to vector<8x256xf32>
    %52 = arith.maximumf %50, %51 : vector<8x256xf32>
    %c17_i32_30 = arith.constant 17 : i32
    %53 = tpu.dynamic_rotate %52 by %c17_i32_30 dim 1 : vector<8x256xf32>, i32 -> vector<8x256xf32>
    %c0_31 = arith.constant 0 : index
    %c0_32 = arith.constant 0 : index
    %54 = vector.load %arg6[%c0_31, %c0_32] : memref<9x256xf32, #tpu.memory_space<vmem>>, vector<1x256xf32>
    %55 = vector.broadcast %54 : vector<1x256xf32> to vector<8x256xf32>
    %56 = arith.mulf %53, %55 : vector<8x256xf32>
    %c0_33 = arith.constant 0 : index
    %c0_34 = arith.constant 0 : index
    %57 = vector.load %arg8[%c0_33, %c0_34] : memref<72x256xf32, #tpu.memory_space<vmem>>, vector<8x256xf32>
    tpu.vector_store %arg8[%c0_33, %c0_34], %56 {strides = array<i32>} : memref<72x256xf32, #tpu.memory_space<vmem>>, vector<8x256xf32>,
    %c16_i32_35 = arith.constant 16 : i32
    %58 = tpu.dynamic_rotate %52 by %c16_i32_35 dim 1 : vector<8x256xf32>, i32 -> vector<8x256xf32>
    %c1_36 = arith.constant 1 : index
    %c0_37 = arith.constant 0 : index
    %59 = vector.load %arg6[%c1_36, %c0_37] : memref<9x256xf32, #tpu.memory_space<vmem>>, vector<1x256xf32>
    %60 = vector.broadcast %59 : vector<1x256xf32> to vector<8x256xf32>
    %61 = arith.mulf %58, %60 : vector<8x256xf32>
    %c8_38 = arith.constant 8 : index
    %c0_39 = arith.constant 0 : index
    %62 = vector.load %arg8[%c8_38, %c0_39] : memref<72x256xf32, #tpu.memory_space<vmem>>, vector<8x256xf32>
    tpu.vector_store %arg8[%c8_38, %c0_39], %61 {strides = array<i32>} : memref<72x256xf32, #tpu.memory_space<vmem>>, vector<8x256xf32>,
    %c15_i32_40 = arith.constant 15 : i32
    %63 = tpu.dynamic_rotate %52 by %c15_i32_40 dim 1 : vector<8x256xf32>, i32 -> vector<8x256xf32>
    %c2_41 = arith.constant 2 : index
    %c0_42 = arith.constant 0 : index
    %64 = vector.load %arg6[%c2_41, %c0_42] : memref<9x256xf32, #tpu.memory_space<vmem>>, vector<1x256xf32>
    %65 = vector.broadcast %64 : vector<1x256xf32> to vector<8x256xf32>
    %66 = arith.mulf %63, %65 : vector<8x256xf32>
    %c16_43 = arith.constant 16 : index
    %c0_44 = arith.constant 0 : index
    %67 = vector.load %arg8[%c16_43, %c0_44] : memref<72x256xf32, #tpu.memory_space<vmem>>, vector<8x256xf32>
    tpu.vector_store %arg8[%c16_43, %c0_44], %66 {strides = array<i32>} : memref<72x256xf32, #tpu.memory_space<vmem>>, vector<8x256xf32>,
    %c1_i32_45 = arith.constant 1 : i32
    %68 = tpu.dynamic_rotate %52 by %c1_i32_45 dim 1 : vector<8x256xf32>, i32 -> vector<8x256xf32>
    %c3_46 = arith.constant 3 : index
    %c0_47 = arith.constant 0 : index
    %69 = vector.load %arg6[%c3_46, %c0_47] : memref<9x256xf32, #tpu.memory_space<vmem>>, vector<1x256xf32>
    %70 = vector.broadcast %69 : vector<1x256xf32> to vector<8x256xf32>
    %71 = arith.mulf %68, %70 : vector<8x256xf32>
    %c24_48 = arith.constant 24 : index
    %c0_49 = arith.constant 0 : index
    %72 = vector.load %arg8[%c24_48, %c0_49] : memref<72x256xf32, #tpu.memory_space<vmem>>, vector<8x256xf32>
    tpu.vector_store %arg8[%c24_48, %c0_49], %71 {strides = array<i32>} : memref<72x256xf32, #tpu.memory_space<vmem>>, vector<8x256xf32>,
    %c32_50 = arith.constant 32 : index
    %c0_51 = arith.constant 0 : index
    %73 = vector.load %arg8[%c32_50, %c0_51] : memref<72x256xf32, #tpu.memory_space<vmem>>, vector<8x256xf32>
    tpu.vector_store %arg8[%c32_50, %c0_51], %52 {strides = array<i32>} : memref<72x256xf32, #tpu.memory_space<vmem>>, vector<8x256xf32>,
    %c255_i32_52 = arith.constant 255 : i32
    %74 = tpu.dynamic_rotate %52 by %c255_i32_52 dim 1 : vector<8x256xf32>, i32 -> vector<8x256xf32>
    %c5_53 = arith.constant 5 : index
    %c0_54 = arith.constant 0 : index
    %75 = vector.load %arg6[%c5_53, %c0_54] : memref<9x256xf32, #tpu.memory_space<vmem>>, vector<1x256xf32>
    %76 = vector.broadcast %75 : vector<1x256xf32> to vector<8x256xf32>
    %77 = arith.mulf %74, %76 : vector<8x256xf32>
    %c40_55 = arith.constant 40 : index
    %c0_56 = arith.constant 0 : index
    %78 = vector.load %arg8[%c40_55, %c0_56] : memref<72x256xf32, #tpu.memory_space<vmem>>, vector<8x256xf32>
    tpu.vector_store %arg8[%c40_55, %c0_56], %77 {strides = array<i32>} : memref<72x256xf32, #tpu.memory_space<vmem>>, vector<8x256xf32>,
    %c241_i32_57 = arith.constant 241 : i32
    %79 = tpu.dynamic_rotate %52 by %c241_i32_57 dim 1 : vector<8x256xf32>, i32 -> vector<8x256xf32>
    %c6_58 = arith.constant 6 : index
    %c0_59 = arith.constant 0 : index
    %80 = vector.load %arg6[%c6_58, %c0_59] : memref<9x256xf32, #tpu.memory_space<vmem>>, vector<1x256xf32>
    %81 = vector.broadcast %80 : vector<1x256xf32> to vector<8x256xf32>
    %82 = arith.mulf %79, %81 : vector<8x256xf32>
    %c48_60 = arith.constant 48 : index
    %c0_61 = arith.constant 0 : index
    %83 = vector.load %arg8[%c48_60, %c0_61] : memref<72x256xf32, #tpu.memory_space<vmem>>, vector<8x256xf32>
    tpu.vector_store %arg8[%c48_60, %c0_61], %82 {strides = array<i32>} : memref<72x256xf32, #tpu.memory_space<vmem>>, vector<8x256xf32>,
    %c240_i32_62 = arith.constant 240 : i32
    %84 = tpu.dynamic_rotate %52 by %c240_i32_62 dim 1 : vector<8x256xf32>, i32 -> vector<8x256xf32>
    %c7_63 = arith.constant 7 : index
    %c0_64 = arith.constant 0 : index
    %85 = vector.load %arg6[%c7_63, %c0_64] : memref<9x256xf32, #tpu.memory_space<vmem>>, vector<1x256xf32>
    %86 = vector.broadcast %85 : vector<1x256xf32> to vector<8x256xf32>
    %87 = arith.mulf %84, %86 : vector<8x256xf32>
    %c56_65 = arith.constant 56 : index
    %c0_66 = arith.constant 0 : index
    %88 = vector.load %arg8[%c56_65, %c0_66] : memref<72x256xf32, #tpu.memory_space<vmem>>, vector<8x256xf32>
    tpu.vector_store %arg8[%c56_65, %c0_66], %87 {strides = array<i32>} : memref<72x256xf32, #tpu.memory_space<vmem>>, vector<8x256xf32>,
    %c239_i32_67 = arith.constant 239 : i32
    %89 = tpu.dynamic_rotate %52 by %c239_i32_67 dim 1 : vector<8x256xf32>, i32 -> vector<8x256xf32>
    %c8_68 = arith.constant 8 : index
    %c0_69 = arith.constant 0 : index
    %90 = vector.load %arg6[%c8_68, %c0_69] : memref<9x256xf32, #tpu.memory_space<vmem>>, vector<1x256xf32>
    %91 = vector.broadcast %90 : vector<1x256xf32> to vector<8x256xf32>
    %92 = arith.mulf %89, %91 : vector<8x256xf32>
    %c64_70 = arith.constant 64 : index
    %c0_71 = arith.constant 0 : index
    %93 = vector.load %arg8[%c64_70, %c0_71] : memref<72x256xf32, #tpu.memory_space<vmem>>, vector<8x256xf32>
    tpu.vector_store %arg8[%c64_70, %c0_71], %92 {strides = array<i32>} : memref<72x256xf32, #tpu.memory_space<vmem>>, vector<8x256xf32>,
    %c0_72 = arith.constant 0 : index
    %c0_73 = arith.constant 0 : index
    %94 = vector.load %arg4[%c0_72, %c0_73] : memref<8x72xf32, #tpu.memory_space<vmem>>, vector<8x72xf32>
    %c0_74 = arith.constant 0 : index
    %c0_75 = arith.constant 0 : index
    %95 = vector.load %arg8[%c0_74, %c0_75] : memref<72x256xf32, #tpu.memory_space<vmem>>, vector<72x256xf32>
    %cst_76 = arith.constant dense<0.000000e+00> : vector<8x256xf32>
    %96 = tpu.matmul %94, %95, %cst_76 {dimension_numbers = #tpu.dot_dimension_numbers<[1], [0], [0], [1], [0, 0, 1, 1], [], []>} : vector<8x72xf32>, vector<72x256xf32>, vector<8x256xf32> -> vector<8x256xf32>
    %c0_77 = arith.constant 0 : index
    %c0_78 = arith.constant 0 : index
    %97 = vector.load %arg5[%c0_77, %c0_78] : memref<8x1xf32, #tpu.memory_space<vmem>>, vector<8x1xf32>
    %98 = vector.broadcast %97 : vector<8x1xf32> to vector<8x256xf32>
    %99 = arith.addf %96, %98 : vector<8x256xf32>
    %100 = arith.addf %99, %3 : vector<8x256xf32>
    %cst_79 = arith.constant 0.000000e+00 : f32
    %101 = vector.broadcast %cst_79 : f32 to vector<8x256xf32>
    %102 = arith.maximumf %100, %101 : vector<8x256xf32>
    %103 = vector.extract_strided_slice %102 {offsets = [0, 0], sizes = [4, 256], strides = [1, 1]} : vector<8x256xf32> to vector<4x256xf32>
    %c0_80 = arith.constant 0 : index
    %c0_81 = arith.constant 0 : index
    %c0_82 = arith.constant 0 : index
    %104 = vector.load %arg7[%c0_80, %c0_81, %c0_82] : memref<1x4x256xf32, #tpu.memory_space<vmem>>, vector<1x4x256xf32>
    %105 = vector.shape_cast %104 : vector<1x4x256xf32> to vector<4x256xf32>
    %106 = vector.shape_cast %103 : vector<4x256xf32> to vector<1x4x256xf32>
    tpu.vector_store %arg7[%c0_80, %c0_81, %c0_82], %106 {strides = array<i32>} : memref<1x4x256xf32, #tpu.memory_space<vmem>>, vector<1x4x256xf32>,
    return
  }
  func.func @transform_0(%arg0: i32) -> (i32, i32, i32) {
    %c0_i32 = arith.constant 0 : i32
    %c0_i32_0 = arith.constant 0 : i32
    %c0_i32_1 = arith.constant 0 : i32
    return %arg0, %c0_i32, %c0_i32_0 : i32, i32, i32
  }
  func.func @transform_1(%arg0: i32) -> (i32, i32) {
    %c0_i32 = arith.constant 0 : i32
    %c0_i32_0 = arith.constant 0 : i32
    %c0_i32_1 = arith.constant 0 : i32
    return %c0_i32, %c0_i32_0 : i32, i32
  }
  func.func @transform_2(%arg0: i32) -> (i32, i32) {
    %c0_i32 = arith.constant 0 : i32
    %c0_i32_0 = arith.constant 0 : i32
    %c0_i32_1 = arith.constant 0 : i32
    return %c0_i32, %c0_i32_0 : i32, i32
  }
  func.func @transform_3(%arg0: i32) -> (i32, i32) {
    %c0_i32 = arith.constant 0 : i32
    %c0_i32_0 = arith.constant 0 : i32
    %c0_i32_1 = arith.constant 0 : i32
    return %c0_i32, %c0_i32_0 : i32, i32
  }
  func.func @transform_4(%arg0: i32) -> (i32, i32) {
    %c0_i32 = arith.constant 0 : i32
    %c0_i32_0 = arith.constant 0 : i32
    %c0_i32_1 = arith.constant 0 : i32
    return %c0_i32, %c0_i32_0 : i32, i32
  }
  func.func @transform_5(%arg0: i32) -> (i32, i32) {
    %c0_i32 = arith.constant 0 : i32
    %c0_i32_0 = arith.constant 0 : i32
    %c0_i32_1 = arith.constant 0 : i32
    return %c0_i32, %c0_i32_0 : i32, i32
  }
  func.func @transform_6(%arg0: i32) -> (i32, i32, i32) {
    %c0_i32 = arith.constant 0 : i32
    %c0_i32_0 = arith.constant 0 : i32
    %c0_i32_1 = arith.constant 0 : i32
    return %arg0, %c0_i32, %c0_i32_0 : i32, i32, i32
  }
}

</mosaic_0001>

<llo_original>
// kernel: tpu_custom_call.1
$region0: #{tpu_custom_call.1}
  #allocation0 [shape = 'u32[]', space=smem, size = 0x4, offset = 0x4, fixed_abs, tag = 'smem constant byte address 0x4 - core index']
  #allocation1 [shape = 'u32[144,128]{1,0:T(1,128)}', space=vmem, size = 0x12000, scoped, tag = 'internal scratch']
  #allocation2 [shape = 'f32[72,256]{1,0:T(8,128)}', space=vmem, size = 0x12000, scoped, tag = 'scratch operand']
  %s0 = inlined_call_operand.hbm [shape: f32[2,4,256], index: 0, kind: input, shape index: {}]
  %s1 = inlined_call_operand.hbm [shape: f32[8,72], index: 1, kind: input, shape index: {}]
  %s2 = inlined_call_operand.vmem [shape: f32[8,1], index: 2, kind: input, shape index: {}]
  %s3 = inlined_call_operand.hbm [shape: f32[8,72], index: 3, kind: input, shape index: {}]
  %s4 = inlined_call_operand.vmem [shape: f32[8,1], index: 4, kind: input, shape index: {}]
  %s5 = inlined_call_operand.vmem [shape: f32[9,256], index: 5, kind: input, shape index: {}]
  %s6 = inlined_call_operand.hbm [shape: f32[2,4,256], index: 6, kind: output, shape index: {}]
  %s7 = sld [smem:[#allocation0]]
  $region69: #{tpu_custom_call.1} parent=0
    _
  %s9 = ssub.s32 1, %s7
  %s10 = scalar_select 0, %s9, %s7
  $region1: #{tpu_custom_call.1} parent=0
    #allocation3 [shape = 'u8[8192]{0}', space=vmem, size = 0x2000, scoped, tag = 'input window, operand 0']
    #allocation4 [shape = 's32[2]{0}', space=sflag, size = 0x8, scoped, tag = 'scoped memory for tpu_custom_call.1']
    #allocation5 [shape = 's32[2]{0}', space=sflag, size = 0x8, scoped, tag = 'scoped memory for tpu_custom_call.1']
    #allocation6 [shape = 'u8[4096]{0}', space=vmem, size = 0x1000, scoped, tag = 'input window, operand 1, single buffered']
    #allocation7 [shape = 's32[1]{0}', space=sflag, size = 0x4, scoped, tag = 'scoped memory for tpu_custom_call.1']
    #allocation8 [shape = 'u8[4096]{0}', space=vmem, size = 0x1000, scoped, tag = 'input window, operand 3, single buffered']
    #allocation9 [shape = 'u8[8192]{0}', space=vmem, size = 0x2000, scoped, tag = 'output window, operand 0']
    %11 = vsyncpa [#allocation4], 0
    %s12 = scalar_lea.sflag [#allocation4], 1
    %13 = vsyncpa %s12, 0
    %14 = vsyncpa [#allocation7], 0
    %15 = vsyncpa [#allocation5], 0
    %s16 = scalar_lea.sflag [#allocation5], 1
    %17 = vsyncpa %s16, 0
    loop: start=0, step=1, limit=4
    $region2: #{tpu_custom_call.1} parent=1 // loop_pre_header
      _
    $region3: #{tpu_custom_call.1} parent=1 // loop_header
      %s19 = sphi 0, %s23
      %p20 = scmp.ge.s32.totalorder %s19, 4
      %s29 = sphi 0, %s31
      %s32 = sphi 0, %s29
      %s33 = sphi 0, %s32
      %s49 = sphi 0, %s33
      %s53 = sphi 0, %s53
      %s55 = sphi 0, %s53
      %s56 = sphi 0, %s55
      %s70 = sphi 0, %s56
      %s74 = sphi 0, %s74
      %s76 = sphi 0, %s74
      %s77 = sphi 0, %s76
      %s91 = sphi 0, %s77
      %s95 = sphi 0, %s95
      %s97 = sphi 0, %s95
      %s98 = sphi 0, %s97
      %s112 = sphi 0, %s98
      %s116 = sphi 0, %s116
      %s118 = sphi 0, %s116
      %s119 = sphi 0, %s118
      %s133 = sphi 0, %s119
      %s137 = sphi 0, %s137
      %s139 = sphi 0, %s137
      %s140 = sphi 0, %s139
      %s154 = sphi 0, %s140
      %s160 = sphi 0, %s162
      %s163 = sphi 0, %s160
      %s164 = sphi 0, %s163
      %s180 = sphi 0, %s164
    $region4: #{tpu_custom_call.1} parent=1 // loop_header_branch
      %22 = sbr.rel (%p20) target = $region8
    $region5: #{tpu_custom_call.1} parent=1 // loop_body
      %s24 = ssub.s32 %s19, 1
      %s25 = ssub.s32 %s19, 2
      %s26 = sadd.s32 %s19, 1
      %s27 = ssub.s32 %s19, %s26
      %p28 = scmp.eq.s32.totalorder %s27, 0
      %s30 = sadd.s32 %s29, 1
      %s31 = scalar_select %p28, %s29, %s30
      %p34 = pneg %p28
      %p35 = scmp.eq.s32.totalorder %s19, 1
      %p36 = por %p34, %p35
      %p37 = scmp.ne.s32.totalorder %s29, %s32
      %p38 = scmp.eq.s32.totalorder %s19, 0
      %p39 = por %p37, %p38
      %p40 = scmp.ne.s32.totalorder %s29, %s32
      %p41 = scmp.eq.s32.totalorder %s24, 1
      %p42 = por %p40, %p41
      %p43 = scmp.ne.s32.totalorder %s32, %s33
      %p44 = scmp.eq.s32.totalorder %s24, 0
      %p45 = por %p43, %p44
      %p46 = scmp.ne.s32.totalorder %s32, %s33
      %p47 = scmp.eq.s32.totalorder %s25, 1
      %p48 = por %p46, %p47
      %p50 = scmp.ne.s32.totalorder %s33, %s49
      %p51 = scmp.eq.s32.totalorder %s25, 0
      %p52 = por %p50, %p51
      %s54 = sadd.s32 %s53, 1
      %p57 = scmp.eq.s32.totalorder %s19, 1
      %p58 = scmp.ne.s32.totalorder %s53, %s55
      %p59 = scmp.eq.s32.totalorder %s19, 0
      %p60 = por %p58, %p59
      %p61 = scmp.ne.s32.totalorder %s53, %s55
      %p62 = scmp.eq.s32.totalorder %s24, 1
      %p63 = por %p61, %p62
      %p64 = scmp.ne.s32.totalorder %s55, %s56
      %p65 = scmp.eq.s32.totalorder %s24, 0
      %p66 = por %p64, %p65
      %p67 = scmp.ne.s32.totalorder %s55, %s56
      %p68 = scmp.eq.s32.totalorder %s25, 1
      %p69 = por %p67, %p68
      %p71 = scmp.ne.s32.totalorder %s56, %s70
      %p72 = scmp.eq.s32.totalorder %s25, 0
      %p73 = por %p71, %p72
      %s75 = sadd.s32 %s74, 1
      %p78 = scmp.eq.s32.totalorder %s19, 1
      %p79 = scmp.ne.s32.totalorder %s74, %s76
      %p80 = scmp.eq.s32.totalorder %s19, 0
      %p81 = por %p79, %p80
      %p82 = scmp.ne.s32.totalorder %s74, %s76
      %p83 = scmp.eq.s32.totalorder %s24, 1
      %p84 = por %p82, %p83
      %p85 = scmp.ne.s32.totalorder %s76, %s77
      %p86 = scmp.eq.s32.totalorder %s24, 0
      %p87 = por %p85, %p86
      %p88 = scmp.ne.s32.totalorder %s76, %s77
      %p89 = scmp.eq.s32.totalorder %s25, 1
      %p90 = por %p88, %p89
      %p92 = scmp.ne.s32.totalorder %s77, %s91
      %p93 = scmp.eq.s32.totalorder %s25, 0
      %p94 = por %p92, %p93
      %s96 = sadd.s32 %s95, 1
      %p99 = scmp.eq.s32.totalorder %s19, 1
      %p100 = scmp.ne.s32.totalorder %s95, %s97
      %p101 = scmp.eq.s32.totalorder %s19, 0
      %p102 = por %p100, %p101
      %p103 = scmp.ne.s32.totalorder %s95, %s97
      %p104 = scmp.eq.s32.totalorder %s24, 1
      %p105 = por %p103, %p104
      %p106 = scmp.ne.s32.totalorder %s97, %s98
      %p107 = scmp.eq.s32.totalorder %s24, 0
      %p108 = por %p106, %p107
      %p109 = scmp.ne.s32.totalorder %s97, %s98
      %p110 = scmp.eq.s32.totalorder %s25, 1
      %p111 = por %p109, %p110
      %p113 = scmp.ne.s32.totalorder %s98, %s112
      %p114 = scmp.eq.s32.totalorder %s25, 0
      %p115 = por %p113, %p114
      %s117 = sadd.s32 %s116, 1
      %p120 = scmp.eq.s32.totalorder %s19, 1
      %p121 = scmp.ne.s32.totalorder %s116, %s118
      %p122 = scmp.eq.s32.totalorder %s19, 0
      %p123 = por %p121, %p122
      %p124 = scmp.ne.s32.totalorder %s116, %s118
      %p125 = scmp.eq.s32.totalorder %s24, 1
      %p126 = por %p124, %p125
      %p127 = scmp.ne.s32.totalorder %s118, %s119
      %p128 = scmp.eq.s32.totalorder %s24, 0
      %p129 = por %p127, %p128
      %p130 = scmp.ne.s32.totalorder %s118, %s119
      %p131 = scmp.eq.s32.totalorder %s25, 1
      %p132 = por %p130, %p131
      %p134 = scmp.ne.s32.totalorder %s119, %s133
      %p135 = scmp.eq.s32.totalorder %s25, 0
      %p136 = por %p134, %p135
      %s138 = sadd.s32 %s137, 1
      %p141 = scmp.eq.s32.totalorder %s19, 1
      %p142 = scmp.ne.s32.totalorder %s137, %s139
      %p143 = scmp.eq.s32.totalorder %s19, 0
      %p144 = por %p142, %p143
      %p145 = scmp.ne.s32.totalorder %s137, %s139
      %p146 = scmp.eq.s32.totalorder %s24, 1
      %p147 = por %p145, %p146
      %p148 = scmp.ne.s32.totalorder %s139, %s140
      %p149 = scmp.eq.s32.totalorder %s24, 0
      %p150 = por %p148, %p149
      %p151 = scmp.ne.s32.totalorder %s139, %s140
      %p152 = scmp.eq.s32.totalorder %s25, 1
      %p153 = por %p151, %p152
      %p155 = scmp.ne.s32.totalorder %s140, %s154
      %p156 = scmp.eq.s32.totalorder %s25, 0
      %p157 = por %p155, %p156
      %s158 = ssub.s32 %s19, %s26
      %p159 = scmp.eq.s32.totalorder %s158, 0
      %s161 = sadd.s32 %s160, 1
      %s162 = scalar_select %p159, %s160, %s161
      %p165 = pneg %p159
      %p166 = scmp.eq.s32.totalorder %s19, 1
      %p167 = por %p165, %p166
      %p168 = scmp.ne.s32.totalorder %s160, %s163
      %p169 = scmp.eq.s32.totalorder %s19, 0
      %p170 = por %p168, %p169
      %p171 = scmp.ne.s32.totalorder %s160, %s163
      %p172 = scmp.eq.s32.totalorder %s24, 1
      %p173 = por %p171, %p172
      %p174 = scmp.ne.s32.totalorder %s163, %s164
      %p175 = scmp.eq.s32.totalorder %s24, 0
      %p176 = por %p174, %p175
      %p177 = scmp.ne.s32.totalorder %s163, %s164
      %p178 = scmp.eq.s32.totalorder %s25, 1
      %p179 = por %p177, %p178
      %p181 = scmp.ne.s32.totalorder %s164, %s180
      %p182 = scmp.eq.s32.totalorder %s25, 0
      %p183 = por %p181, %p182
      %p184 = scmp.le.s32.totalorder 1, %s19
      %p185 = scmp.lt.s32.totalorder %s19, 3
      %p186 = pnand %p184, %p185
      %p187 = pneg %p186
      // Predicated region
      $region9: #{tpu_custom_call.1} parent=5 // pred_check
        _
      $region10: #{tpu_custom_call.1} parent=5 // pred_check_branch
        %189 = sbr.rel (%p186) target = $region12
      $region11: #{tpu_custom_call.1} parent=5 // pred_region
        %s190 = ssub.s32 %s19, 1
        // Predicated region
        $region13: #{tpu_custom_call.1} parent=11 // pred_check
          %p191 = pneg %p66
        $region14: #{tpu_custom_call.1} parent=11 // pred_check_branch
          %193 = sbr.rel (%p191) target = $region16
        $region15: #{tpu_custom_call.1} parent=11 // pred_region
          %s195 = ssub.s32 128, 128
          %196 = vsyncadd [#allocation7], %s195
          %s198 = sshll.u32 [#allocation6], 4
          %s199 = int_to_ptr.vmem [resolvable:$true] %s198
          %201 = dma.hbm_to_vmem [thread:$0]  %s1, 128, %s199, [#allocation7]
        $region16: #{tpu_custom_call.1} parent=11 // pred_fallthru
          _
        // Predicated region
        $region17: #{tpu_custom_call.1} parent=11 // pred_check
          %p202 = pneg %p87
        $region18: #{tpu_custom_call.1} parent=11 // pred_check_branch
          %204 = sbr.rel (%p202) target = $region20
        $region19: #{tpu_custom_call.1} parent=11 // pred_region
          _
        $region20: #{tpu_custom_call.1} parent=11 // pred_fallthru
          _
        // Predicated region
        $region21: #{tpu_custom_call.1} parent=11 // pred_check
          %p205 = pneg %p108
        $region22: #{tpu_custom_call.1} parent=11 // pred_check_branch
          %207 = sbr.rel (%p205) target = $region24
        $region23: #{tpu_custom_call.1} parent=11 // pred_region
          %s209 = ssub.s32 128, 128
          %210 = vsyncadd [#allocation7], %s209
          %s212 = sshll.u32 [#allocation8], 4
          %s213 = int_to_ptr.vmem [resolvable:$true] %s212
          %215 = dma.hbm_to_vmem [thread:$0]  %s3, 128, %s213, [#allocation7]
        $region24: #{tpu_custom_call.1} parent=11 // pred_fallthru
          _
        // Predicated region
        $region25: #{tpu_custom_call.1} parent=11 // pred_check
          %p216 = pneg %p129
        $region26: #{tpu_custom_call.1} parent=11 // pred_check_branch
          %218 = sbr.rel (%p216) target = $region28
        $region27: #{tpu_custom_call.1} parent=11 // pred_region
          _
        $region28: #{tpu_custom_call.1} parent=11 // pred_fallthru
          _
        // Predicated region
        $region29: #{tpu_custom_call.1} parent=11 // pred_check
          %p219 = pneg %p150
        $region30: #{tpu_custom_call.1} parent=11 // pred_check_branch
          %221 = sbr.rel (%p219) target = $region32
        $region31: #{tpu_custom_call.1} parent=11 // pred_region
          _
        $region32: #{tpu_custom_call.1} parent=11 // pred_fallthru
          _
      $region12: #{tpu_custom_call.1} parent=5 // pred_fallthru
        _
      %p222 = scmp.lt.s32.totalorder %s19, 2
      // Predicated region
      $region33: #{tpu_custom_call.1} parent=5 // pred_check
        %p223 = pneg %p222
      $region34: #{tpu_custom_call.1} parent=5 // pred_check_branch
        %225 = sbr.rel (%p223) target = $region36
      $region35: #{tpu_custom_call.1} parent=5 // pred_region
        // Predicated region
        $region37: #{tpu_custom_call.1} parent=35 // pred_check
          %p226 = pneg %p39
        $region38: #{tpu_custom_call.1} parent=35 // pred_check_branch
          %228 = sbr.rel (%p226) target = $region40
        $region39: #{tpu_custom_call.1} parent=35 // pred_region
          %s229 = sand.u32 %s29, 1
          %s230 = scalar_lea.sflag [#allocation4], %s229
          %s231 = sand.u32 %s29, 1
          %s232 = smul.addr %s231, 8
          %s233 = scalar_lea.vmem [#allocation3], %s232
          %s235 = ssub.s32 128, 128
          %236 = vsyncadd %s230, %s235
          %s237 = smul.addr %s19, 2
          %s238 = smul.addr %s237, 64
          %s239 = scalar_lea.hbm %s0, %s238
          %s241 = sshll.u32 %s233, 4
          %s242 = int_to_ptr.vmem [resolvable:$true] %s241
          %244 = dma.hbm_to_vmem [thread:$0]  %s239, 128, %s242, %s230
        $region40: #{tpu_custom_call.1} parent=35 // pred_fallthru
          _
      $region36: #{tpu_custom_call.1} parent=5 // pred_fallthru
        _
      %p245 = scmp.le.s32.totalorder 1, %s19
      %p246 = scmp.lt.s32.totalorder %s19, 3
      %p247 = pnand %p245, %p246
      %p248 = pneg %p247
      // Predicated region
      $region41: #{tpu_custom_call.1} parent=5 // pred_check
        _
      $region42: #{tpu_custom_call.1} parent=5 // pred_check_branch
        %250 = sbr.rel (%p247) target = $region44
      $region43: #{tpu_custom_call.1} parent=5 // pred_region
        %s251 = ssub.s32 %s19, 1
        %s252 = sand.u32 %s32, 1
        %s253 = scalar_lea.sflag [#allocation4], %s252
        %s254 = sand.u32 %s32, 1
        %s255 = smul.addr %s254, 8
        %s256 = scalar_lea.vmem [#allocation3], %s255
        // Predicated region
        $region45: #{tpu_custom_call.1} parent=43 // pred_check
          %p257 = pneg %p45
        $region46: #{tpu_custom_call.1} parent=43 // pred_check_branch
          %259 = sbr.rel (%p257) target = $region48
        $region47: #{tpu_custom_call.1} parent=43 // pred_region
          %260 = dma.done %s253, 128
        $region48: #{tpu_custom_call.1} parent=43 // pred_fallthru
          _
        // Predicated region
        $region49: #{tpu_custom_call.1} parent=43 // pred_check
          %p261 = pneg %p66
        $region50: #{tpu_custom_call.1} parent=43 // pred_check_branch
          %263 = sbr.rel (%p261) target = $region52
        $region51: #{tpu_custom_call.1} parent=43 // pred_region
          %264 = dma.done [#allocation7], 128
        $region52: #{tpu_custom_call.1} parent=43 // pred_fallthru
          _
        // Predicated region
        $region53: #{tpu_custom_call.1} parent=43 // pred_check
          %p265 = pneg %p108
        $region54: #{tpu_custom_call.1} parent=43 // pred_check_branch
          %267 = sbr.rel (%p265) target = $region56
        $region55: #{tpu_custom_call.1} parent=43 // pred_region
          %268 = dma.done [#allocation7], 128
        $region56: #{tpu_custom_call.1} parent=43 // pred_fallthru
          _
        %s269 = sand.u32 %s32, 1
        %s270 = scalar_lea.sflag [#allocation4], %s269
        %s271 = sand.u32 %s32, 1
        %s272 = smul.addr %s271, 8
        %s273 = scalar_lea.vmem [#allocation3], %s272
        %p274 = pneg %p45
        %p275 = pneg %p42
        %p276 = pneg %p66
        %p277 = pneg %p63
        %p278 = pneg %p87
        %p279 = pneg %p84
        %p280 = pneg %p108
        %p281 = pneg %p105
        %p282 = pneg %p129
        %p283 = pneg %p126
        %p284 = pneg %p150
        %p285 = pneg %p147
        %p286 = pneg %p176
        %p287 = pneg %p173
        %s288 = sand.u32 %s163, 1
        %s289 = scalar_lea.sflag [#allocation5], %s288
        %s290 = sand.u32 %s163, 1
        %s291 = smul.addr %s290, 8
        %s292 = scalar_lea.vmem [#allocation9], %s291
        %v293 = vld [vmem:[%s256] sm:$0xff]
        %v295 = vcombine.high %v293, %v293
        %vm297 = vcmask 1043456
        %v298 = vsel %vm297, %v293, 0.0
        %v299 = vsel %vm297, %v295, 0.0
        %300 = vrot.lane.b32.xlu0 %v298, 17
        %v301 = vpop.permute.xlu0 %300
        %302 = vrot.lane.b32.xlu0 %v299, 17
        %v303 = vpop.permute.xlu0 %302
        %v304 = vlaneseq
        %v305 = vand.u32 %v304, 127
        %vm306 = vcmp.lt.s32.totalorder %v305, 17
        %v307 = vsel %vm306, %v301, %v303
        %v308 = vsel %vm306, %v303, %v301
        %v309 = vld [vmem:[%s5] ss:$8 sm:$0x3]
        %v311 = vlaneseq
        %v312 = vshrl.u32 %v311, 7
        %v313 = vsub.s32 0, %v312
        %v314 = vrot.slane %v309, %v313
        %v315 = vlaneseq
        %v316 = vshrl.u32 %v315, 7
        %v317 = vsub.s32 1, %v316
        %v318 = vrot.slane %v309, %v317
        %v321 = vmul.f32 %v308, %v314
        %v322 = vmul.f32 %v307, %v318
        %323 = vst [vmem:[#allocation2] sm:$0xff] %v321
        %324 = vst [vmem:[#allocation2 + $0x8] sm:$0xff] %v322
        %325 = vrot.lane.b32.xlu0 %v298, 16
        %v326 = vpop.permute.xlu0 %325
        %327 = vrot.lane.b32.xlu0 %v299, 16
        %v328 = vpop.permute.xlu0 %327
        %vm329 = vcmp.lt.s32.totalorder %v305, 16
        %v330 = vsel %vm329, %v326, %v328
        %v331 = vsel %vm329, %v328, %v326
        %s332 = scalar_lea.vmem %s5, 1
        %v333 = vld [vmem:[%s332] ss:$8 sm:$0x3]
        %v335 = vlaneseq
        %v336 = vshrl.u32 %v335, 7
        %v337 = vsub.s32 0, %v336
        %v338 = vrot.slane %v333, %v337
        %v339 = vlaneseq
        %v340 = vshrl.u32 %v339, 7
        %v341 = vsub.s32 1, %v340
        %v342 = vrot.slane %v333, %v341
        %v345 = vmul.f32 %v331, %v338
        %v346 = vmul.f32 %v330, %v342
        %347 = vst [vmem:[#allocation2 + $0x10] sm:$0xff] %v345
        %348 = vst [vmem:[#allocation2 + $0x18] sm:$0xff] %v346
        %349 = vrot.lane.b32.xlu0 %v298, 15
        %v350 = vpop.permute.xlu0 %349
        %351 = vrot.lane.b32.xlu0 %v299, 15
        %v352 = vpop.permute.xlu0 %351
        %vm353 = vcmp.lt.s32.totalorder %v305, 15
        %v354 = vsel %vm353, %v350, %v352
        %v355 = vsel %vm353, %v352, %v350
        %s356 = scalar_lea.vmem %s5, 2
        %v357 = vld [vmem:[%s356] ss:$8 sm:$0x3]
        %v359 = vlaneseq
        %v360 = vshrl.u32 %v359, 7
        %v361 = vsub.s32 0, %v360
        %v362 = vrot.slane %v357, %v361
        %v363 = vlaneseq
        %v364 = vshrl.u32 %v363, 7
        %v365 = vsub.s32 1, %v364
        %v366 = vrot.slane %v357, %v365
        %v369 = vmul.f32 %v355, %v362
        %v370 = vmul.f32 %v354, %v366
        %371 = vst [vmem:[#allocation2 + $0x20] sm:$0xff] %v369
        %372 = vst [vmem:[#allocation2 + $0x28] sm:$0xff] %v370
        %373 = vrot.lane.b32.xlu0 %v298, 1
        %v374 = vpop.permute.xlu0 %373
        %375 = vrot.lane.b32.xlu0 %v299, 1
        %v376 = vpop.permute.xlu0 %375
        %vm377 = vcmp.lt.s32.totalorder %v305, 1
        %v378 = vsel %vm377, %v374, %v376
        %v379 = vsel %vm377, %v376, %v374
        %s380 = scalar_lea.vmem %s5, 3
        %v381 = vld [vmem:[%s380] ss:$8 sm:$0x3]
        %v383 = vlaneseq
        %v384 = vshrl.u32 %v383, 7
        %v385 = vsub.s32 0, %v384
        %v386 = vrot.slane %v381, %v385
        %v387 = vlaneseq
        %v388 = vshrl.u32 %v387, 7
        %v389 = vsub.s32 1, %v388
        %v390 = vrot.slane %v381, %v389
        %v393 = vmul.f32 %v379, %v386
        %v394 = vmul.f32 %v378, %v390
        %395 = vst [vmem:[#allocation2 + $0x30] sm:$0xff] %v393
        %396 = vst [vmem:[#allocation2 + $0x38] sm:$0xff] %v394
        %397 = vst [vmem:[#allocation2 + $0x40] sm:$0xff] %v298
        %398 = vst [vmem:[#allocation2 + $0x48] sm:$0xff] %v299
        %399 = vrot.lane.b32.xlu0 %v298, 127
        %v400 = vpop.permute.xlu0 %399
        %401 = vrot.lane.b32.xlu0 %v299, 127
        %v402 = vpop.permute.xlu0 %401
        %vm403 = vcmp.lt.s32.totalorder %v305, 127
        %v404 = vsel %vm403, %v400, %v402
        %v405 = vsel %vm403, %v402, %v400
        %s406 = scalar_lea.vmem %s5, 5
        %v407 = vld [vmem:[%s406] ss:$8 sm:$0x3]
        %v409 = vlaneseq
        %v410 = vshrl.u32 %v409, 7
        %v411 = vsub.s32 0, %v410
        %v412 = vrot.slane %v407, %v411
        %v413 = vlaneseq
        %v414 = vshrl.u32 %v413, 7
        %v415 = vsub.s32 1, %v414
        %v416 = vrot.slane %v407, %v415
        %v419 = vmul.f32 %v404, %v412
        %v420 = vmul.f32 %v405, %v416
        %421 = vst [vmem:[#allocation2 + $0x50] sm:$0xff] %v419
        %422 = vst [vmem:[#allocation2 + $0x58] sm:$0xff] %v420
        %423 = vrot.lane.b32.xlu0 %v298, 113
        %v424 = vpop.permute.xlu0 %423
        %425 = vrot.lane.b32.xlu0 %v299, 113
        %v426 = vpop.permute.xlu0 %425
        %vm427 = vcmp.lt.s32.totalorder %v305, 113
        %v428 = vsel %vm427, %v424, %v426
        %v429 = vsel %vm427, %v426, %v424
        %s430 = scalar_lea.vmem %s5, 6
        %v431 = vld [vmem:[%s430] ss:$8 sm:$0x3]
        %v433 = vlaneseq
        %v434 = vshrl.u32 %v433, 7
        %v435 = vsub.s32 0, %v434
        %v436 = vrot.slane %v431, %v435
        %v437 = vlaneseq
        %v438 = vshrl.u32 %v437, 7
        %v439 = vsub.s32 1, %v438
        %v440 = vrot.slane %v431, %v439
        %v443 = vmul.f32 %v428, %v436
        %v444 = vmul.f32 %v429, %v440
        %445 = vst [vmem:[#allocation2 + $0x60] sm:$0xff] %v443
        %446 = vst [vmem:[#allocation2 + $0x68] sm:$0xff] %v444
        %447 = vrot.lane.b32.xlu0 %v298, 112
        %v448 = vpop.permute.xlu0 %447
        %449 = vrot.lane.b32.xlu0 %v299, 112
        %v450 = vpop.permute.xlu0 %449
        %vm451 = vcmp.lt.s32.totalorder %v305, 112
        %v452 = vsel %vm451, %v448, %v450
        %v453 = vsel %vm451, %v450, %v448
        %s454 = scalar_lea.vmem %s5, 7
        %v455 = vld [vmem:[%s454] ss:$8 sm:$0x3]
        %v457 = vlaneseq
        %v458 = vshrl.u32 %v457, 7
        %v459 = vsub.s32 0, %v458
        %v460 = vrot.slane %v455, %v459
        %v461 = vlaneseq
        %v462 = vshrl.u32 %v461, 7
        %v463 = vsub.s32 1, %v462
        %v464 = vrot.slane %v455, %v463
        %v467 = vmul.f32 %v452, %v460
        %v468 = vmul.f32 %v453, %v464
        %469 = vst [vmem:[#allocation2 + $0x70] sm:$0xff] %v467
        %470 = vst [vmem:[#allocation2 + $0x78] sm:$0xff] %v468
        %471 = vrot.lane.b32.xlu0 %v298, 111
        %v472 = vpop.permute.xlu0 %471
        %473 = vrot.lane.b32.xlu0 %v299, 111
        %v474 = vpop.permute.xlu0 %473
        %vm475 = vcmp.lt.s32.totalorder %v305, 111
        %v476 = vsel %vm475, %v472, %v474
        %v477 = vsel %vm475, %v474, %v472
        %s478 = scalar_lea.vmem %s5, 16
        %v479 = vld [vmem:[%s478] ss:$8 sm:$0x3]
        %v481 = vlaneseq
        %v482 = vshrl.u32 %v481, 7
        %v483 = vsub.s32 0, %v482
        %v484 = vrot.slane %v479, %v483
        %v485 = vlaneseq
        %v486 = vshrl.u32 %v485, 7
        %v487 = vsub.s32 1, %v486
        %v488 = vrot.slane %v479, %v487
        %v491 = vmul.f32 %v476, %v484
        %v492 = vmul.f32 %v477, %v488
        %493 = vst [vmem:[#allocation2 + $0x80] sm:$0xff] %v491
        %494 = vst [vmem:[#allocation2 + $0x88] sm:$0xff] %v492
        %v495 = vld [vmem:[#allocation6] sm:$0xff]
        %v496 = vld [vmem:[#allocation2] sm:$0xff]
        %v497 = vld [vmem:[#allocation2 + $0x8] sm:$0xff]
        %v498 = vld [vmem:[#allocation2 + $0x10] sm:$0xff]
        %v499 = vld [vmem:[#allocation2 + $0x18] sm:$0xff]
        %v500 = vld [vmem:[#allocation2 + $0x20] sm:$0xff]
        %v501 = vld [vmem:[#allocation2 + $0x28] sm:$0xff]
        %v502 = vld [vmem:[#allocation2 + $0x30] sm:$0xff]
        %v503 = vld [vmem:[#allocation2 + $0x38] sm:$0xff]
        %v504 = vld [vmem:[#allocation2 + $0x40] sm:$0xff]
        %v505 = vld [vmem:[#allocation2 + $0x48] sm:$0xff]
        %v506 = vld [vmem:[#allocation2 + $0x50] sm:$0xff]
        %v507 = vld [vmem:[#allocation2 + $0x58] sm:$0xff]
        %v508 = vld [vmem:[#allocation2 + $0x60] sm:$0xff]
        %v509 = vld [vmem:[#allocation2 + $0x68] sm:$0xff]
        %v510 = vld [vmem:[#allocation2 + $0x70] sm:$0xff]
        %v511 = vld [vmem:[#allocation2 + $0x78] sm:$0xff]
        %v512 = vld [vmem:[#allocation2 + $0x80] sm:$0xff]
        %v513 = vld [vmem:[#allocation2 + $0x88] sm:$0xff]
        %v514 = vld [vmem:[%s2] sm:$0xff]
        %516 = vset.pattern.permute.xlu0 0
        %517 = vperm.xlu0 %516, %v514
        %v518 = vpop.permute.xlu0 %517
        %vm520 = vcmask 588800
        %v522 = vsel %vm520, %v495, 0
        %524 = vmatprep.subr.mxu0 %v497
        %525 = vmatpush1.msra.mxu0 %v496
        %526 = vmatprep.subr.mxu0 %v499
        %527 = vmatpush1.msra.mxu0 %v498
        %528 = vmatprep.subr.mxu0 %v501
        %529 = vmatpush1.msra.mxu0 %v500
        %530 = vmatprep.subr.mxu0 %v503
        %531 = vmatpush1.msra.mxu0 %v502
        %532 = vmatprep.subr.mxu0 %v505
        %533 = vmatpush1.msra.mxu0 %v504
        %534 = vmatprep.subr.mxu0 %v507
        %535 = vmatpush1.msra.mxu0 %v506
        %536 = vmatprep.subr.mxu0 %v509
        %537 = vmatpush1.msra.mxu0 %v508
        %538 = vmatprep.subr.mxu0 %v511
        %539 = vmatpush1.msra.mxu0 %v510
        %540 = vmatprep.subr.mxu0 %v513
        %541 = vmatpush1.msra.mxu0 %v512
        %542 = vmatprep.subr.mxu0 0.0
        %543 = vmatpush1.msra.mxu0 0.0
        %544 = vmatprep.subr.mxu0 0.0
        %545 = vmatpush1.msra.mxu0 0.0
        %546 = vmatprep.subr.mxu0 0.0
        %547 = vmatpush1.msra.mxu0 0.0
        %548 = vmatprep.subr.mxu0 0.0
        %549 = vmatpush1.msra.mxu0 0.0
        %550 = vmatprep.subr.mxu0 0.0
        %551 = vmatpush1.msra.mxu0 0.0
        %552 = vmatprep.subr.mxu0 0.0
        %553 = vmatpush1.msra.mxu0 0.0
        %554 = vmatprep.subr.mxu0 0.0
        %555 = vmatpush1.msra.mxu0 0.0
        %556 = vmatprep.subr.mxu0 0.0
        %557 = vmatpush1.msra.mxu0 0.0
        %558 = vmatprep.subr.mxu0 0.0
        %559 = vmatpush1.msra.mxu0 0.0
        %560 = vmatprep.subr.mxu0 0.0
        %561 = vmatpush1.msra.mxu0 0.0
        %562 = vmatprep.subr.mxu0 0.0
        %563 = vmatpush1.msra.mxu0 0.0
        %564 = vmatprep.subr.mxu0 0.0
        %565 = vmatpush1.msra.mxu0 0.0
        %566 = vmatprep.subr.mxu0 0.0
        %567 = vmatpush1.msra.mxu0 0.0
        %568 = vmatprep.subr.mxu0 0.0
        %569 = vmatpush1.msra.mxu0 0.0
        %570 = vmatprep.subr.mxu0 0.0
        %571 = vmatpush1.msra.mxu0 0.0
        %572 = vmatprep.subr.mxu0 0.0
        %573 = vmatpush1.msra.mxu0 0.0
        %574 = vmatprep.subr.mxu0 0.0
        %575 = vmatpush1.msra.mxu0 0.0
        %576 = vmatprep.subr.mxu0 0.0
        %577 = vmatpush1.msra.mxu0 0.0
        %578 = vmatprep.subr.mxu0 0.0
        %579 = vmatpush1.msra.mxu0 0.0
        %580 = vmatprep.subr.mxu0 0.0
        %581 = vmatpush1.msra.mxu0 0.0
        %582 = vmatprep.subr.mxu0 0.0
        %583 = vmatpush1.msra.mxu0 0.0
        %584 = vmatprep.subr.mxu0 0.0
        %585 = vmatpush1.msra.mxu0 0.0
        %586 = vmatprep.subr.mxu0 0.0
        %587 = vmatpush1.msra.mxu0 0.0
        %588 = vmatprep.mubr.f32.mxu0 0.0
        %589 = vmatmul.mubr.f32.gmra.mrb[0].mxu0 %v522
        %v590 = vpop.f32.mrb[0].mxu0
        %v591 = vadd.f32 %v518, %v590
        %v592 = vpop.f32.mrb[0].mxu0
        %v593 = vadd.f32 %v518, %v592
        %594 = vdwg.mxu0
        %v595 = vmax.f32 %v591, 0.0
        %v596 = vmax.f32 %v593, 0.0
        %597 = vrot.lane.b32.xlu0 %v595, 17
        %v598 = vpop.permute.xlu0 %597
        %599 = vrot.lane.b32.xlu0 %v596, 17
        %v600 = vpop.permute.xlu0 %599
        %v601 = vsel %vm306, %v598, %v600
        %v602 = vsel %vm306, %v600, %v598
        %v603 = vld [vmem:[%s5] ss:$8 sm:$0x3]
        %v605 = vlaneseq
        %v606 = vshrl.u32 %v605, 7
        %v607 = vsub.s32 0, %v606
        %v608 = vrot.slane %v603, %v607
        %v609 = vlaneseq
        %v610 = vshrl.u32 %v609, 7
        %v611 = vsub.s32 1, %v610
        %v612 = vrot.slane %v603, %v611
        %v615 = vmul.f32 %v602, %v608
        %v616 = vmul.f32 %v601, %v612
        %617 = vst [vmem:[#allocation2] sm:$0xff] %v615
        %618 = vst [vmem:[#allocation2 + $0x8] sm:$0xff] %v616
        %619 = vrot.lane.b32.xlu0 %v595, 16
        %v620 = vpop.permute.xlu0 %619
        %621 = vrot.lane.b32.xlu0 %v596, 16
        %v622 = vpop.permute.xlu0 %621
        %v623 = vsel %vm329, %v620, %v622
        %v624 = vsel %vm329, %v622, %v620
        %v625 = vld [vmem:[%s332] ss:$8 sm:$0x3]
        %v627 = vlaneseq
        %v628 = vshrl.u32 %v627, 7
        %v629 = vsub.s32 0, %v628
        %v630 = vrot.slane %v625, %v629
        %v631 = vlaneseq
        %v632 = vshrl.u32 %v631, 7
        %v633 = vsub.s32 1, %v632
        %v634 = vrot.slane %v625, %v633
        %v637 = vmul.f32 %v624, %v630
        %v638 = vmul.f32 %v623, %v634
        %639 = vst [vmem:[#allocation2 + $0x10] sm:$0xff] %v637
        %640 = vst [vmem:[#allocation2 + $0x18] sm:$0xff] %v638
        %641 = vrot.lane.b32.xlu0 %v595, 15
        %v642 = vpop.permute.xlu0 %641
        %643 = vrot.lane.b32.xlu0 %v596, 15
        %v644 = vpop.permute.xlu0 %643
        %v645 = vsel %vm353, %v642, %v644
        %v646 = vsel %vm353, %v644, %v642
        %v647 = vld [vmem:[%s356] ss:$8 sm:$0x3]
        %v649 = vlaneseq
        %v650 = vshrl.u32 %v649, 7
        %v651 = vsub.s32 0, %v650
        %v652 = vrot.slane %v647, %v651
        %v653 = vlaneseq
        %v654 = vshrl.u32 %v653, 7
        %v655 = vsub.s32 1, %v654
        %v656 = vrot.slane %v647, %v655
        %v659 = vmul.f32 %v646, %v652
        %v660 = vmul.f32 %v645, %v656
        %661 = vst [vmem:[#allocation2 + $0x20] sm:$0xff] %v659
        %662 = vst [vmem:[#allocation2 + $0x28] sm:$0xff] %v660
        %663 = vrot.lane.b32.xlu0 %v595, 1
        %v664 = vpop.permute.xlu0 %663
        %665 = vrot.lane.b32.xlu0 %v596, 1
        %v666 = vpop.permute.xlu0 %665
        %v667 = vsel %vm377, %v664, %v666
        %v668 = vsel %vm377, %v666, %v664
        %v669 = vld [vmem:[%s380] ss:$8 sm:$0x3]
        %v671 = vlaneseq
        %v672 = vshrl.u32 %v671, 7
        %v673 = vsub.s32 0, %v672
        %v674 = vrot.slane %v669, %v673
        %v675 = vlaneseq
        %v676 = vshrl.u32 %v675, 7
        %v677 = vsub.s32 1, %v676
        %v678 = vrot.slane %v669, %v677
        %v681 = vmul.f32 %v668, %v674
        %v682 = vmul.f32 %v667, %v678
        %683 = vst [vmem:[#allocation2 + $0x30] sm:$0xff] %v681
        %684 = vst [vmem:[#allocation2 + $0x38] sm:$0xff] %v682
        %685 = vst [vmem:[#allocation2 + $0x40] sm:$0xff] %v595
        %686 = vst [vmem:[#allocation2 + $0x48] sm:$0xff] %v596
        %687 = vrot.lane.b32.xlu0 %v595, 127
        %v688 = vpop.permute.xlu0 %687
        %689 = vrot.lane.b32.xlu0 %v596, 127
        %v690 = vpop.permute.xlu0 %689
        %v691 = vsel %vm403, %v688, %v690
        %v692 = vsel %vm403, %v690, %v688
        %v693 = vld [vmem:[%s406] ss:$8 sm:$0x3]
        %v695 = vlaneseq
        %v696 = vshrl.u32 %v695, 7
        %v697 = vsub.s32 0, %v696
        %v698 = vrot.slane %v693, %v697
        %v699 = vlaneseq
        %v700 = vshrl.u32 %v699, 7
        %v701 = vsub.s32 1, %v700
        %v702 = vrot.slane %v693, %v701
        %v705 = vmul.f32 %v691, %v698
        %v706 = vmul.f32 %v692, %v702
        %707 = vst [vmem:[#allocation2 + $0x50] sm:$0xff] %v705
        %708 = vst [vmem:[#allocation2 + $0x58] sm:$0xff] %v706
        %709 = vrot.lane.b32.xlu0 %v595, 113
        %v710 = vpop.permute.xlu0 %709
        %711 = vrot.lane.b32.xlu0 %v596, 113
        %v712 = vpop.permute.xlu0 %711
        %v713 = vsel %vm427, %v710, %v712
        %v714 = vsel %vm427, %v712, %v710
        %v715 = vld [vmem:[%s430] ss:$8 sm:$0x3]
        %v717 = vlaneseq
        %v718 = vshrl.u32 %v717, 7
        %v719 = vsub.s32 0, %v718
        %v720 = vrot.slane %v715, %v719
        %v721 = vlaneseq
        %v722 = vshrl.u32 %v721, 7
        %v723 = vsub.s32 1, %v722
        %v724 = vrot.slane %v715, %v723
        %v727 = vmul.f32 %v713, %v720
        %v728 = vmul.f32 %v714, %v724
        %729 = vst [vmem:[#allocation2 + $0x60] sm:$0xff] %v727
        %730 = vst [vmem:[#allocation2 + $0x68] sm:$0xff] %v728
        %731 = vrot.lane.b32.xlu0 %v595, 112
        %v732 = vpop.permute.xlu0 %731
        %733 = vrot.lane.b32.xlu0 %v596, 112
        %v734 = vpop.permute.xlu0 %733
        %v735 = vsel %vm451, %v732, %v734
        %v736 = vsel %vm451, %v734, %v732
        %v737 = vld [vmem:[%s454] ss:$8 sm:$0x3]
        %v739 = vlaneseq
        %v740 = vshrl.u32 %v739, 7
        %v741 = vsub.s32 0, %v740
        %v742 = vrot.slane %v737, %v741
        %v743 = vlaneseq
        %v744 = vshrl.u32 %v743, 7
        %v745 = vsub.s32 1, %v744
        %v746 = vrot.slane %v737, %v745
        %v749 = vmul.f32 %v735, %v742
        %v750 = vmul.f32 %v736, %v746
        %751 = vst [vmem:[#allocation2 + $0x70] sm:$0xff] %v749
        %752 = vst [vmem:[#allocation2 + $0x78] sm:$0xff] %v750
        %753 = vrot.lane.b32.xlu0 %v595, 111
        %v754 = vpop.permute.xlu0 %753
        %755 = vrot.lane.b32.xlu0 %v596, 111
        %v756 = vpop.permute.xlu0 %755
        %v757 = vsel %vm475, %v754, %v756
        %v758 = vsel %vm475, %v756, %v754
        %v759 = vld [vmem:[%s478] ss:$8 sm:$0x3]
        %v761 = vlaneseq
        %v762 = vshrl.u32 %v761, 7
        %v763 = vsub.s32 0, %v762
        %v764 = vrot.slane %v759, %v763
        %v765 = vlaneseq
        %v766 = vshrl.u32 %v765, 7
        %v767 = vsub.s32 1, %v766
        %v768 = vrot.slane %v759, %v767
        %v771 = vmul.f32 %v757, %v764
        %v772 = vmul.f32 %v758, %v768
        %773 = vst [vmem:[#allocation2 + $0x80] sm:$0xff] %v771
        %774 = vst [vmem:[#allocation2 + $0x88] sm:$0xff] %v772
        %v775 = vld [vmem:[#allocation8] sm:$0xff]
        %v776 = vld [vmem:[#allocation2] sm:$0xff]
        %v777 = vld [vmem:[#allocation2 + $0x8] sm:$0xff]
        %v778 = vld [vmem:[#allocation2 + $0x10] sm:$0xff]
        %v779 = vld [vmem:[#allocation2 + $0x18] sm:$0xff]
        %v780 = vld [vmem:[#allocation2 + $0x20] sm:$0xff]
        %v781 = vld [vmem:[#allocation2 + $0x28] sm:$0xff]
        %v782 = vld [vmem:[#allocation2 + $0x30] sm:$0xff]
        %v783 = vld [vmem:[#allocation2 + $0x38] sm:$0xff]
        %v784 = vld [vmem:[#allocation2 + $0x40] sm:$0xff]
        %v785 = vld [vmem:[#allocation2 + $0x48] sm:$0xff]
        %v786 = vld [vmem:[#allocation2 + $0x50] sm:$0xff]
        %v787 = vld [vmem:[#allocation2 + $0x58] sm:$0xff]
        %v788 = vld [vmem:[#allocation2 + $0x60] sm:$0xff]
        %v789 = vld [vmem:[#allocation2 + $0x68] sm:$0xff]
        %v790 = vld [vmem:[#allocation2 + $0x70] sm:$0xff]
        %v791 = vld [vmem:[#allocation2 + $0x78] sm:$0xff]
        %v792 = vld [vmem:[#allocation2 + $0x80] sm:$0xff]
        %v793 = vld [vmem:[#allocation2 + $0x88] sm:$0xff]
        %v794 = vld [vmem:[%s4] sm:$0xff]
        %796 = vset.pattern.permute.xlu0 0
        %797 = vperm.xlu0 %796, %v794
        %v798 = vpop.permute.xlu0 %797
        %v801 = vsel %vm520, %v775, 0
        %803 = vmatprep.subr.mxu0 %v777
        %804 = vmatpush1.msra.mxu0 %v776
        %805 = vmatprep.subr.mxu0 %v779
        %806 = vmatpush1.msra.mxu0 %v778
        %807 = vmatprep.subr.mxu0 %v781
        %808 = vmatpush1.msra.mxu0 %v780
        %809 = vmatprep.subr.mxu0 %v783
        %810 = vmatpush1.msra.mxu0 %v782
        %811 = vmatprep.subr.mxu0 %v785
        %812 = vmatpush1.msra.mxu0 %v784
        %813 = vmatprep.subr.mxu0 %v787
        %814 = vmatpush1.msra.mxu0 %v786
        %815 = vmatprep.subr.mxu0 %v789
        %816 = vmatpush1.msra.mxu0 %v788
        %817 = vmatprep.subr.mxu0 %v791
        %818 = vmatpush1.msra.mxu0 %v790
        %819 = vmatprep.subr.mxu0 %v793
        %820 = vmatpush1.msra.mxu0 %v792
        %821 = vmatprep.subr.mxu0 0.0
        %822 = vmatpush1.msra.mxu0 0.0
        %823 = vmatprep.subr.mxu0 0.0
        %824 = vmatpush1.msra.mxu0 0.0
        %825 = vmatprep.subr.mxu0 0.0
        %826 = vmatpush1.msra.mxu0 0.0
        %827 = vmatprep.subr.mxu0 0.0
        %828 = vmatpush1.msra.mxu0 0.0
        %829 = vmatprep.subr.mxu0 0.0
        %830 = vmatpush1.msra.mxu0 0.0
        %831 = vmatprep.subr.mxu0 0.0
        %832 = vmatpush1.msra.mxu0 0.0
        %833 = vmatprep.subr.mxu0 0.0
        %834 = vmatpush1.msra.mxu0 0.0
        %835 = vmatprep.subr.mxu0 0.0
        %836 = vmatpush1.msra.mxu0 0.0
        %837 = vmatprep.subr.mxu0 0.0
        %838 = vmatpush1.msra.mxu0 0.0
        %839 = vmatprep.subr.mxu0 0.0
        %840 = vmatpush1.msra.mxu0 0.0
        %841 = vmatprep.subr.mxu0 0.0
        %842 = vmatpush1.msra.mxu0 0.0
        %843 = vmatprep.subr.mxu0 0.0
        %844 = vmatpush1.msra.mxu0 0.0
        %845 = vmatprep.subr.mxu0 0.0
        %846 = vmatpush1.msra.mxu0 0.0
        %847 = vmatprep.subr.mxu0 0.0
        %848 = vmatpush1.msra.mxu0 0.0
        %849 = vmatprep.subr.mxu0 0.0
        %850 = vmatpush1.msra.mxu0 0.0
        %851 = vmatprep.subr.mxu0 0.0
        %852 = vmatpush1.msra.mxu0 0.0
        %853 = vmatprep.subr.mxu0 0.0
        %854 = vmatpush1.msra.mxu0 0.0
        %855 = vmatprep.subr.mxu0 0.0
        %856 = vmatpush1.msra.mxu0 0.0
        %857 = vmatprep.subr.mxu0 0.0
        %858 = vmatpush1.msra.mxu0 0.0
        %859 = vmatprep.subr.mxu0 0.0
        %860 = vmatpush1.msra.mxu0 0.0
        %861 = vmatprep.subr.mxu0 0.0
        %862 = vmatpush1.msra.mxu0 0.0
        %863 = vmatprep.subr.mxu0 0.0
        %864 = vmatpush1.msra.mxu0 0.0
        %865 = vmatprep.subr.mxu0 0.0
        %866 = vmatpush1.msra.mxu0 0.0
        %867 = vmatprep.mubr.f32.mxu0 0.0
        %868 = vmatmul.mubr.f32.gmra.mrb[0].mxu0 %v801
        %v869 = vpop.f32.mrb[0].mxu0
        %v870 = vadd.f32 %v798, %v869
        %v871 = vpop.f32.mrb[0].mxu0
        %v872 = vadd.f32 %v798, %v871
        %873 = vdwg.mxu0
        %v874 = vadd.f32 %v870, %v298
        %v875 = vadd.f32 %v872, %v299
        %v876 = vmax.f32 %v874, 0.0
        %v877 = vmax.f32 %v875, 0.0
        %v880 = vcombine.low %v876, %v877
        %882 = vst [vmem:[%s292] sm:$0xff] %v880
        %s883 = sand.u32 %s163, 1
        %s884 = scalar_lea.sflag [#allocation5], %s883
        %s885 = sand.u32 %s163, 1
        %s886 = smul.addr %s885, 8
        %s887 = scalar_lea.vmem [#allocation9], %s886
        // Predicated region
        $region57: #{tpu_custom_call.1} parent=43 // pred_check
          %p888 = pneg %p173
        $region58: #{tpu_custom_call.1} parent=43 // pred_check_branch
          %890 = sbr.rel (%p888) target = $region60
        $region59: #{tpu_custom_call.1} parent=43 // pred_region
          %s892 = ssub.s32 128, 128
          %893 = vsyncadd %s884, %s892
          %s894 = smul.addr %s24, 2
          %s895 = smul.addr %s894, 64
          %s896 = scalar_lea.hbm %s6, %s895
          %s898 = sshll.u32 %s887, 4
          %s899 = int_to_ptr.vmem [resolvable:$true] %s898
          %901 = dma.vmem_to_hbm [thread:$0]  %s899, 128, %s896, %s884
        $region60: #{tpu_custom_call.1} parent=43 // pred_fallthru
          _
      $region44: #{tpu_custom_call.1} parent=5 // pred_fallthru
        _
      %p902 = scmp.le.s32.totalorder 2, %s19
      // Predicated region
      $region61: #{tpu_custom_call.1} parent=5 // pred_check
        %p903 = pneg %p902
      $region62: #{tpu_custom_call.1} parent=5 // pred_check_branch
        %905 = sbr.rel (%p903) target = $region64
      $region63: #{tpu_custom_call.1} parent=5 // pred_region
        %s906 = ssub.s32 %s19, 2
        // Predicated region
        $region65: #{tpu_custom_call.1} parent=63 // pred_check
          %p907 = pneg %p179
        $region66: #{tpu_custom_call.1} parent=63 // pred_check_branch
          %909 = sbr.rel (%p907) target = $region68
        $region67: #{tpu_custom_call.1} parent=63 // pred_region
          %s910 = sand.u32 %s164, 1
          %s911 = scalar_lea.sflag [#allocation5], %s910
          %s912 = sand.u32 %s164, 1
          %s913 = smul.addr %s912, 8
          %s914 = scalar_lea.vmem [#allocation9], %s913
          %915 = dma.done %s911, 128
        $region68: #{tpu_custom_call.1} parent=63 // pred_fallthru
          _
      $region64: #{tpu_custom_call.1} parent=5 // pred_fallthru
        _
    $region6: #{tpu_custom_call.1} parent=1 // loop_footer
      %s23 = sadd.s32 1, %s19
    $region7: #{tpu_custom_call.1} parent=1 // loop_footer_branch
      %18 = sbr.rel target = $region3
    $region8: #{tpu_custom_call.1} parent=1 // loop_exit
      _
    %916 = vsyncpa [#allocation4], 1
    %s917 = scalar_lea.sflag [#allocation4], 1
    %918 = vsyncpa %s917, 1
    %919 = vsyncpa [#allocation7], 1
    %920 = vsyncpa [#allocation5], 1
    %s921 = scalar_lea.sflag [#allocation5], 1
    %922 = vsyncpa %s921, 1

</llo_original>
